<compile_context>
chip_gen: v7x
topology: tpu7x:2x2x1
jax: 0.10.0
libtpu: 0.0.40
codegen_flags: <defaults>
</compile_context>

<pallas_src>
import functools
import math

import jax
import jax.numpy as jnp
from jax import lax
from jax.experimental import pallas as pl
from jax.experimental.pallas import tpu as pltpu


def _round_up(x: int, m: int) -> int:
    return ((x + m - 1) // m) * m


def _lora_kernel(x_ref, w_ref, bias_ref, a_ref, b_lora_ref, o_ref,
                 acc_ref, xa_ref):
    """One (i, j, k) grid step of: out = x @ W^T + bias + (x @ A^T) @ B_scaled^T.

    x_ref      : (TM, TK)   bf16   activations tile
    w_ref      : (TN, TK)   bf16   frozen weight tile (PyTorch (out, in) layout)
    bias_ref   : (1,  TN)   f32    frozen bias tile
    a_ref      : (128, TK)  bf16   lora_A tile (rank padded to 128 lanes)
    b_lora_ref : (TN, 128)  bf16   lora_B tile, pre-scaled by alpha/rank
    o_ref      : (TM, TN)   f32    output tile
    acc_ref    : (TM, TN)   f32    VMEM accumulator for the main matmul
    xa_ref     : (TM, 128)  f32    VMEM accumulator for x @ A^T (per M tile)
    """
    j = pl.program_id(1)
    k = pl.program_id(2)
    nk = pl.num_programs(2)

    @pl.when(k == 0)
    def _init_acc():
        acc_ref[...] = jnp.zeros_like(acc_ref)

    @pl.when(jnp.logical_and(j == 0, k == 0))
    def _init_xa():
        xa_ref[...] = jnp.zeros_like(xa_ref)

    x = x_ref[...]                                           # (TM, TK) bf16

    # Frozen path: x @ W^T  — contract trailing dims (no wrapper transpose).
    acc_ref[...] += lax.dot_general(
        x, w_ref[...],
        dimension_numbers=(((1,), (1,)), ((), ())),
        preferred_element_type=jnp.float32)

    # Low-rank path: xa = x @ A^T depends only on (i, k). Accumulate it once
    # per M tile — during the j == 0 sweep — and reuse for all N tiles.
    @pl.when(j == 0)
    def _accum_xa():
        xa_ref[...] += lax.dot_general(
            x, a_ref[...],
            dimension_numbers=(((1,), (1,)), ((), ())),
            preferred_element_type=jnp.float32)

    @pl.when(k == nk - 1)
    def _finalize():
        # lora_B is pre-scaled by alpha/rank in the wrapper, so no (TM,TN)
        # elementwise scaling is needed here.
        lora = lax.dot_general(
            xa_ref[...].astype(b_lora_ref.dtype), b_lora_ref[...],
            dimension_numbers=(((1,), (1,)), ((), ())),
            preferred_element_type=jnp.float32)
        o_ref[...] = (acc_ref[...] + bias_ref[...] + lora).astype(o_ref.dtype)


def lora_forward(x, w_orig, b_orig, lora_a, lora_b, *, alpha, rank,
                 tm_max=512, tn_max=512, tk_max=512):
    """LoRA forward.

    x:      (batch, seq, in_features)   f32
    w_orig: (out_features, in_features) f32   (PyTorch nn.Linear layout)
    b_orig: (out_features,)             f32
    lora_a: (rank, in_features)         f32
    lora_b: (out_features, rank)        f32
    """
    batch, seq, in_features = x.shape
    out_features = w_orig.shape[0]
    scaling = float(alpha) / float(rank)
    compute_dtype = jnp.bfloat16
    out_dtype = x.dtype

    m = batch * seq
    x2 = x.reshape(m, in_features)

    # Tile sizes: respect the (8, 128) layout constraint and clamp to the
    # (rounded-up) problem size so small shapes don't over-pad.
    tm = min(tm_max, _round_up(m, 8))
    tn = min(tn_max, _round_up(out_features, 128))
    tk = min(tk_max, _round_up(in_features, 128))
    r_pad = _round_up(rank, 128)          # dense 128-lane low-rank path

    m_pad = _round_up(m, tm)
    n_pad = _round_up(out_features, tn)
    k_pad = _round_up(in_features, tk)

    def _pad2(arr, rows, cols):
        pr, pc = rows - arr.shape[0], cols - arr.shape[1]
        if pr or pc:
            arr = jnp.pad(arr, ((0, pr), (0, pc)))
        return arr

    xp = _pad2(x2, m_pad, k_pad).astype(compute_dtype)            # (Mp, Kp)
    wp = _pad2(w_orig, n_pad, k_pad).astype(compute_dtype)        # (Np, Kp)
    ap = _pad2(lora_a, r_pad, k_pad).astype(compute_dtype)        # (Rp, Kp)
    # Fold alpha/rank scaling into the tiny lora_B operand (one-time, f32).
    bp = _pad2(lora_b * scaling, n_pad, r_pad).astype(compute_dtype)  # (Np, Rp)
    biasp = jnp.pad(b_orig, (0, n_pad - out_features)).astype(
        jnp.float32).reshape(1, n_pad)

    grid = (m_pad // tm, n_pad // tn, k_pad // tk)

    out_padded = pl.pallas_call(
        _lora_kernel,
        out_shape=jax.ShapeDtypeStruct((m_pad, n_pad), out_dtype),
        grid_spec=pltpu.PrefetchScalarGridSpec(
            num_scalar_prefetch=0,
            grid=grid,
            in_specs=[
                pl.BlockSpec((tm, tk), lambda i, j, k: (i, k)),      # x
                pl.BlockSpec((tn, tk), lambda i, j, k: (j, k)),      # W (out,in)
                pl.BlockSpec((1, tn), lambda i, j, k: (0, j)),       # bias
                pl.BlockSpec((r_pad, tk), lambda i, j, k: (0, k)),   # lora_A
                pl.BlockSpec((tn, r_pad), lambda i, j, k: (j, 0)),   # lora_B*s
            ],
            out_specs=pl.BlockSpec((tm, tn), lambda i, j, k: (i, j)),
            scratch_shapes=[
                pltpu.VMEM((tm, tn), jnp.float32),     # main accumulator
                pltpu.VMEM((tm, r_pad), jnp.float32),  # xa = x @ A^T cache
            ],
        ),
        compiler_params=pltpu.CompilerParams(
            # M is parallel (megacore sharding on v7x). N must be "arbitrary"
            # because the xa cache is computed during j==0 and reused for
            # j>0; K is the reduction axis.
            dimension_semantics=("parallel", "arbitrary", "arbitrary"),
            vmem_limit_bytes=32 * 1024 * 1024,
        ),
    )(xp, wp, biasp, ap, bp)

    return out_padded[:m, :out_features].reshape(batch, seq, out_features)


def _reference(x, w_orig, b_orig, lora_a, lora_b, alpha, rank):
    scaling = alpha / rank
    orig = jnp.einsum("bsk,nk->bsn", x, w_orig) + b_orig
    xa = jnp.einsum("bsk,rk->bsr", x, lora_a)
    lora = jnp.einsum("bsr,nr->bsn", xa, lora_b)
    return orig + lora * scaling


if __name__ == "__main__":
    # Small shapes consistent with the module's forward.
    batch, seq = 2, 8
    in_features, out_features = 32, 32
    rank, alpha = 16, 32.0

    key = jax.random.PRNGKey(0)
    k_x, k_w, k_b, k_a = jax.random.split(key, 4)

    x = jax.random.normal(k_x, (batch, seq, in_features), dtype=jnp.float32)

    # Original frozen linear: PyTorch default nn.Linear init (uniform).
    bound_w = 1.0 / math.sqrt(in_features)
    w_orig = jax.random.uniform(k_w, (out_features, in_features),
                                minval=-bound_w, maxval=bound_w,
                                dtype=jnp.float32)
    b_orig = jax.random.uniform(k_b, (out_features,),
                                minval=-bound_w, maxval=bound_w,
                                dtype=jnp.float32)

    # lora_A: kaiming_uniform_(a=sqrt(5)) => U(-bound, bound),
    #   bound = sqrt(6 / ((1 + a^2) * fan_in)) = sqrt(1 / fan_in)
    bound_a = math.sqrt(1.0 / in_features)
    lora_a = jax.random.uniform(k_a, (rank, in_features),
                                minval=-bound_a, maxval=bound_a,
                                dtype=jnp.float32)
    # lora_B is zero-initialized in the module; use deterministic nonzero
    # values here so the low-rank path is actually exercised numerically.
    lora_b = (jnp.arange(out_features * rank, dtype=jnp.float32)
              .reshape(out_features, rank) % 7 - 3.0) * 0.01

    out = lora_forward(x, w_orig, b_orig, lora_a, lora_b,
                       alpha=alpha, rank=rank)
    out = jax.block_until_ready(out)

    ref = _reference(x, w_orig, b_orig, lora_a, lora_b, alpha, rank)
    assert out.shape == (batch, seq, out_features)
    # Kernel runs bf16 MXU inputs with f32 accumulation -> loose tolerance
    # against the pure-f32 reference.
    assert jnp.allclose(out, ref, atol=5e-2, rtol=5e-2), "mismatch vs reference"

    print("KERNEL_OK")
</pallas_src>

<mosaic_0001>
module attributes {stable_mosaic.version = 11 : i64} {
  func.func @_lora_kernel(%arg0: i32, %arg1: i32, %arg2: i32, %arg3: memref<16x128xbf16, #tpu.memory_space<vmem>>, %arg4: memref<128x128xbf16, #tpu.memory_space<vmem>>, %arg5: memref<1x128xf32, #tpu.memory_space<vmem>>, %arg6: memref<128x128xbf16, #tpu.memory_space<vmem>>, %arg7: memref<128x128xbf16, #tpu.memory_space<vmem>>, %arg8: memref<16x128xf32, #tpu.memory_space<vmem>>, %arg9: memref<16x128xf32, #tpu.memory_space<vmem>>, %arg10: memref<16x128xf32, #tpu.memory_space<vmem>>) attributes {dimension_semantics = [#tpu.dimension_semantics<parallel>, #tpu.dimension_semantics<arbitrary>, #tpu.dimension_semantics<arbitrary>], iteration_bounds = array<i64: 1, 1, 1>, scalar_prefetch = 0 : i64, scratch_operands = 2 : i64, tpu.core_type = #tpu.core_type<tc>, window_params = [{transform_indices = @transform_0, window_bounds = array<i64: 16, 128>}, {transform_indices = @transform_1, window_bounds = array<i64: 128, 128>}, {transform_indices = @transform_2, window_bounds = array<i64: 1, 128>}, {transform_indices = @transform_3, window_bounds = array<i64: 128, 128>}, {transform_indices = @transform_4, window_bounds = array<i64: 128, 128>}, {transform_indices = @transform_5, window_bounds = array<i64: 16, 128>}]} {
    %c0_i32 = arith.constant 0 : i32
    %0 = arith.cmpi eq, %arg2, %c0_i32 : i32
    %1 = arith.extui %0 : i1 to i32
    %c0_i32_0 = arith.constant 0 : i32
    %2 = arith.cmpi ne, %1, %c0_i32_0 : i32
    scf.if %2 {
      %cst_15 = arith.constant 0.000000e+00 : f32
      %20 = vector.broadcast %cst_15 : f32 to vector<16x128xf32>
      %c0_16 = arith.constant 0 : index
      %c0_17 = arith.constant 0 : index
      %21 = vector.load %arg9[%c0_16, %c0_17] : memref<16x128xf32, #tpu.memory_space<vmem>>, vector<16x128xf32>
      tpu.vector_store %arg9[%c0_16, %c0_17], %20 {strides = array<i32>} : memref<16x128xf32, #tpu.memory_space<vmem>>, vector<16x128xf32>,
    } else {
    }
    %c0_i32_1 = arith.constant 0 : i32
    %3 = arith.cmpi eq, %arg1, %c0_i32_1 : i32
    %c0_i32_2 = arith.constant 0 : i32
    %4 = arith.cmpi eq, %arg2, %c0_i32_2 : i32
    %5 = arith.andi %3, %4 : i1
    %6 = arith.extui %5 : i1 to i32
    %c0_i32_3 = arith.constant 0 : i32
    %7 = arith.cmpi ne, %6, %c0_i32_3 : i32
    scf.if %7 {
      %cst_15 = arith.constant 0.000000e+00 : f32
      %20 = vector.broadcast %cst_15 : f32 to vector<16x128xf32>
      %c0_16 = arith.constant 0 : index
      %c0_17 = arith.constant 0 : index
      %21 = vector.load %arg10[%c0_16, %c0_17] : memref<16x128xf32, #tpu.memory_space<vmem>>, vector<16x128xf32>
      tpu.vector_store %arg10[%c0_16, %c0_17], %20 {strides = array<i32>} : memref<16x128xf32, #tpu.memory_space<vmem>>, vector<16x128xf32>,
    } else {
    }
    %c0 = arith.constant 0 : index
    %c0_4 = arith.constant 0 : index
    %8 = vector.load %arg3[%c0, %c0_4] : memref<16x128xbf16, #tpu.memory_space<vmem>>, vector<16x128xbf16>
    %c0_5 = arith.constant 0 : index
    %c0_6 = arith.constant 0 : index
    %9 = vector.load %arg9[%c0_5, %c0_6] : memref<16x128xf32, #tpu.memory_space<vmem>>, vector<16x128xf32>
    %c0_7 = arith.constant 0 : index
    %c0_8 = arith.constant 0 : index
    %10 = vector.load %arg4[%c0_7, %c0_8] : memref<128x128xbf16, #tpu.memory_space<vmem>>, vector<128x128xbf16>
    %cst = arith.constant dense<0.000000e+00> : vector<16x128xf32>
    %11 = tpu.matmul %8, %10, %cst {dimension_numbers = #tpu.dot_dimension_numbers<[1], [1], [0], [0], [0, 0, 1, 0], [], []>} : vector<16x128xbf16>, vector<128x128xbf16>, vector<16x128xf32> -> vector<16x128xf32>
    %12 = arith.addf %9, %11 : vector<16x128xf32>
    %c0_9 = arith.constant 0 : index
    %c0_10 = arith.constant 0 : index
    %13 = vector.load %arg9[%c0_9, %c0_10] : memref<16x128xf32, #tpu.memory_space<vmem>>, vector<16x128xf32>
    tpu.vector_store %arg9[%c0_9, %c0_10], %12 {strides = array<i32>} : memref<16x128xf32, #tpu.memory_space<vmem>>, vector<16x128xf32>,
    %c0_i32_11 = arith.constant 0 : i32
    %14 = arith.cmpi eq, %arg1, %c0_i32_11 : i32
    %15 = arith.extui %14 : i1 to i32
    %c0_i32_12 = arith.constant 0 : i32
    %16 = arith.cmpi ne, %15, %c0_i32_12 : i32
    scf.if %16 {
      %c0_15 = arith.constant 0 : index
      %c0_16 = arith.constant 0 : index
      %20 = vector.load %arg10[%c0_15, %c0_16] : memref<16x128xf32, #tpu.memory_space<vmem>>, vector<16x128xf32>
      %c0_17 = arith.constant 0 : index
      %c0_18 = arith.constant 0 : index
      %21 = vector.load %arg6[%c0_17, %c0_18] : memref<128x128xbf16, #tpu.memory_space<vmem>>, vector<128x128xbf16>
      %cst_19 = arith.constant dense<0.000000e+00> : vector<16x128xf32>
      %22 = tpu.matmul %8, %21, %cst_19 {dimension_numbers = #tpu.dot_dimension_numbers<[1], [1], [0], [0], [0, 0, 1, 0], [], []>} : vector<16x128xbf16>, vector<128x128xbf16>, vector<16x128xf32> -> vector<16x128xf32>
      %23 = arith.addf %20, %22 : vector<16x128xf32>
      %c0_20 = arith.constant 0 : index
      %c0_21 = arith.constant 0 : index
      %24 = vector.load %arg10[%c0_20, %c0_21] : memref<16x128xf32, #tpu.memory_space<vmem>>, vector<16x128xf32>
      tpu.vector_store %arg10[%c0_20, %c0_21], %23 {strides = array<i32>} : memref<16x128xf32, #tpu.memory_space<vmem>>, vector<16x128xf32>,
    } else {
    }
    %c0_i32_13 = arith.constant 0 : i32
    %17 = arith.cmpi eq, %arg2, %c0_i32_13 : i32
    %18 = arith.extui %17 : i1 to i32
    %c0_i32_14 = arith.constant 0 : i32
    %19 = arith.cmpi ne, %18, %c0_i32_14 : i32
    scf.if %19 {
      %c0_15 = arith.constant 0 : index
      %c0_16 = arith.constant 0 : index
      %20 = vector.load %arg10[%c0_15, %c0_16] : memref<16x128xf32, #tpu.memory_space<vmem>>, vector<16x128xf32>
      %21 = arith.truncf %20 : vector<16x128xf32> to vector<16x128xbf16>
      %c0_17 = arith.constant 0 : index
      %c0_18 = arith.constant 0 : index
      %22 = vector.load %arg7[%c0_17, %c0_18] : memref<128x128xbf16, #tpu.memory_space<vmem>>, vector<128x128xbf16>
      %cst_19 = arith.constant dense<0.000000e+00> : vector<16x128xf32>
      %23 = tpu.matmul %21, %22, %cst_19 {dimension_numbers = #tpu.dot_dimension_numbers<[1], [1], [0], [0], [0, 0, 1, 0], [], []>} : vector<16x128xbf16>, vector<128x128xbf16>, vector<16x128xf32> -> vector<16x128xf32>
      %c0_20 = arith.constant 0 : index
      %c0_21 = arith.constant 0 : index
      %24 = vector.load %arg9[%c0_20, %c0_21] : memref<16x128xf32, #tpu.memory_space<vmem>>, vector<16x128xf32>
      %c0_22 = arith.constant 0 : index
      %c0_23 = arith.constant 0 : index
      %25 = vector.load %arg5[%c0_22, %c0_23] : memref<1x128xf32, #tpu.memory_space<vmem>>, vector<1x128xf32>
      %26 = vector.broadcast %25 : vector<1x128xf32> to vector<16x128xf32>
      %27 = arith.addf %24, %26 : vector<16x128xf32>
      %28 = arith.addf %27, %23 : vector<16x128xf32>
      %c0_24 = arith.constant 0 : index
      %c0_25 = arith.constant 0 : index
      %29 = vector.load %arg8[%c0_24, %c0_25] : memref<16x128xf32, #tpu.memory_space<vmem>>, vector<16x128xf32>
      tpu.vector_store %arg8[%c0_24, %c0_25], %28 {strides = array<i32>} : memref<16x128xf32, #tpu.memory_space<vmem>>, vector<16x128xf32>,
    } else {
    }
    return
  }
  func.func @transform_0(%arg0: i32, %arg1: i32, %arg2: i32) -> (i32, i32) {
    %c0_i32 = arith.constant 0 : i32
    return %arg0, %arg2 : i32, i32
  }
  func.func @transform_1(%arg0: i32, %arg1: i32, %arg2: i32) -> (i32, i32) {
    %c0_i32 = arith.constant 0 : i32
    return %arg1, %arg2 : i32, i32
  }
  func.func @transform_2(%arg0: i32, %arg1: i32, %arg2: i32) -> (i32, i32) {
    %c0_i32 = arith.constant 0 : i32
    %c0_i32_0 = arith.constant 0 : i32
    return %c0_i32, %arg1 : i32, i32
  }
  func.func @transform_3(%arg0: i32, %arg1: i32, %arg2: i32) -> (i32, i32) {
    %c0_i32 = arith.constant 0 : i32
    %c0_i32_0 = arith.constant 0 : i32
    return %c0_i32, %arg2 : i32, i32
  }
  func.func @transform_4(%arg0: i32, %arg1: i32, %arg2: i32) -> (i32, i32) {
    %c0_i32 = arith.constant 0 : i32
    %c0_i32_0 = arith.constant 0 : i32
    return %arg1, %c0_i32 : i32, i32
  }
  func.func @transform_5(%arg0: i32, %arg1: i32, %arg2: i32) -> (i32, i32) {
    %c0_i32 = arith.constant 0 : i32
    return %arg0, %arg1 : i32, i32
  }
}

</mosaic_0001>

<llo_original>
// kernel: tpu_custom_call.1
$region0: #{tpu_custom_call.1}
  #allocation0 [shape = 'u32[]', space=smem, size = 0x4, offset = 0x4, fixed_abs, tag = 'smem constant byte address 0x4 - core index']
  #allocation1 [shape = 'u32[144,128]{1,0:T(1,128)}', space=vmem, size = 0x12000, scoped, tag = 'internal scratch']
  #allocation2 [shape = 'f32[16,128]{1,0:T(8,128)}', space=vmem, size = 0x2000, scoped, tag = 'scratch operand']
  #allocation3 [shape = 'f32[16,128]{1,0:T(8,128)}', space=vmem, size = 0x2000, scoped, tag = 'scratch operand']
  %s0 = inlined_call_operand.hbm [shape: bf16[16,128], index: 0, kind: input, shape index: {}]
  %s1 = inlined_call_operand.hbm [shape: bf16[128,128], index: 1, kind: input, shape index: {}]
  %s2 = inlined_call_operand.vmem [shape: f32[1,128], index: 2, kind: input, shape index: {}]
  %s3 = inlined_call_operand.hbm [shape: bf16[128,128], index: 3, kind: input, shape index: {}]
  %s4 = inlined_call_operand.hbm [shape: bf16[128,128], index: 4, kind: input, shape index: {}]
  %s5 = inlined_call_operand.hbm [shape: f32[16,128], index: 5, kind: output, shape index: {}]
  %s6 = sld [smem:[#allocation0]]
  $region62: #{tpu_custom_call.1} parent=0
    _
  %s8 = ssub.s32 1, %s6
  %s9 = scalar_select 0, %s8, %s6
  $region1: #{tpu_custom_call.1} parent=0
    #allocation4 [shape = 'u8[4096]{0}', space=vmem, size = 0x1000, scoped, tag = 'input window, operand 0, single buffered']
    #allocation5 [shape = 's32[1]{0}', space=sflag, size = 0x4, scoped, tag = 'scoped memory for tpu_custom_call.1']
    #allocation6 [shape = 's32[1]{0}', space=sflag, size = 0x4, scoped, tag = 'scoped memory for tpu_custom_call.1']
    #allocation7 [shape = 'u8[32768]{0}', space=vmem, size = 0x8000, scoped, tag = 'input window, operand 1, single buffered']
    #allocation8 [shape = 's32[1]{0}', space=sflag, size = 0x4, scoped, tag = 'scoped memory for tpu_custom_call.1']
    #allocation9 [shape = 'u8[32768]{0}', space=vmem, size = 0x8000, scoped, tag = 'input window, operand 3, single buffered']
    #allocation10 [shape = 'u8[32768]{0}', space=vmem, size = 0x8000, scoped, tag = 'input window, operand 4, single buffered']
    #allocation11 [shape = 's32[1]{0}', space=sflag, size = 0x4, scoped, tag = 'scoped memory for tpu_custom_call.1']
    #allocation12 [shape = 'u8[8192]{0}', space=vmem, size = 0x2000, scoped, tag = 'output window, operand 0, single buffered']
    %10 = vsyncpa [#allocation5], 0
    %11 = vsyncpa [#allocation8], 0
    %12 = vsyncpa [#allocation11], 0
    %13 = vsyncpa [#allocation6], 0
    // Predicated region
    $region2: #{tpu_custom_call.1} parent=1 // pred_check
      _
    $region3: #{tpu_custom_call.1} parent=1 // pred_check_branch
      %15 = sbr.rel (0) target = $region5
    $region4: #{tpu_custom_call.1} parent=1 // pred_region
      %s17 = ssub.s32 128, 128
      %18 = vsyncadd [#allocation5], %s17
      %s19 = sshll.u32 [#allocation4], 4
      %s20 = int_to_ptr.vmem [resolvable:$true] %s19
      %25 = dma.hbm_to_vmem [thread:$0]  %s0, 128, %s20, [#allocation5], 64, 64, 4
    $region5: #{tpu_custom_call.1} parent=1 // pred_fallthru
      _
    // Predicated region
    $region6: #{tpu_custom_call.1} parent=1 // pred_check
      _
    $region7: #{tpu_custom_call.1} parent=1 // pred_check_branch
      %27 = sbr.rel (0) target = $region9
    $region8: #{tpu_custom_call.1} parent=1 // pred_region
      %s29 = ssub.s32 1024, 1024
      %30 = vsyncadd [#allocation8], %s29
      %s31 = sshll.u32 [#allocation7], 4
      %s32 = int_to_ptr.vmem [resolvable:$true] %s31
      %37 = dma.hbm_to_vmem [thread:$0]  %s1, 1024, %s32, [#allocation8], 64, 64, 4
    $region9: #{tpu_custom_call.1} parent=1 // pred_fallthru
      _
    // Predicated region
    $region10: #{tpu_custom_call.1} parent=1 // pred_check
      _
    $region11: #{tpu_custom_call.1} parent=1 // pred_check_branch
      %39 = sbr.rel (0) target = $region13
    $region12: #{tpu_custom_call.1} parent=1 // pred_region
      _
    $region13: #{tpu_custom_call.1} parent=1 // pred_fallthru
      _
    // Predicated region
    $region14: #{tpu_custom_call.1} parent=1 // pred_check
      _
    $region15: #{tpu_custom_call.1} parent=1 // pred_check_branch
      %41 = sbr.rel (0) target = $region17
    $region16: #{tpu_custom_call.1} parent=1 // pred_region
      %s43 = ssub.s32 1024, 1024
      %44 = vsyncadd [#allocation8], %s43
      %s45 = sshll.u32 [#allocation9], 4
      %s46 = int_to_ptr.vmem [resolvable:$true] %s45
      %51 = dma.hbm_to_vmem [thread:$0]  %s3, 1024, %s46, [#allocation8], 64, 64, 4
    $region17: #{tpu_custom_call.1} parent=1 // pred_fallthru
      _
    // Predicated region
    $region18: #{tpu_custom_call.1} parent=1 // pred_check
      _
    $region19: #{tpu_custom_call.1} parent=1 // pred_check_branch
      %53 = sbr.rel (0) target = $region21
    $region20: #{tpu_custom_call.1} parent=1 // pred_region
      %s55 = ssub.s32 1024, 1024
      %56 = vsyncadd [#allocation11], %s55
      %s57 = sshll.u32 [#allocation10], 4
      %s58 = int_to_ptr.vmem [resolvable:$true] %s57
      %63 = dma.hbm_to_vmem [thread:$0]  %s4, 1024, %s58, [#allocation11], 64, 64, 4
    $region21: #{tpu_custom_call.1} parent=1 // pred_fallthru
      _
    // Predicated region
    $region22: #{tpu_custom_call.1} parent=1 // pred_check
      _
    $region23: #{tpu_custom_call.1} parent=1 // pred_check_branch
      %65 = sbr.rel (0) target = $region25
    $region24: #{tpu_custom_call.1} parent=1 // pred_region
      %66 = dma.done [#allocation5], 128
    $region25: #{tpu_custom_call.1} parent=1 // pred_fallthru
      _
    // Predicated region
    $region26: #{tpu_custom_call.1} parent=1 // pred_check
      _
    $region27: #{tpu_custom_call.1} parent=1 // pred_check_branch
      %68 = sbr.rel (0) target = $region29
    $region28: #{tpu_custom_call.1} parent=1 // pred_region
      %69 = dma.done [#allocation8], 1024
    $region29: #{tpu_custom_call.1} parent=1 // pred_fallthru
      _
    // Predicated region
    $region30: #{tpu_custom_call.1} parent=1 // pred_check
      _
    $region31: #{tpu_custom_call.1} parent=1 // pred_check_branch
      %71 = sbr.rel (0) target = $region33
    $region32: #{tpu_custom_call.1} parent=1 // pred_region
      %72 = dma.done [#allocation8], 1024
    $region33: #{tpu_custom_call.1} parent=1 // pred_fallthru
      _
    // Predicated region
    $region34: #{tpu_custom_call.1} parent=1 // pred_check
      _
    $region35: #{tpu_custom_call.1} parent=1 // pred_check_branch
      %74 = sbr.rel (0) target = $region37
    $region36: #{tpu_custom_call.1} parent=1 // pred_region
      %75 = dma.done [#allocation11], 1024
    $region37: #{tpu_custom_call.1} parent=1 // pred_fallthru
      _
    %p77 = scmp.eq.s32.totalorder 0, 0
    // Predicated region
    $region38: #{tpu_custom_call.1} parent=1 // pred_check
      %p78 = pneg %p77
    $region39: #{tpu_custom_call.1} parent=1 // pred_check_branch
      %80 = sbr.rel (%p78) target = $region41
    $region40: #{tpu_custom_call.1} parent=1 // pred_region
      %81 = vst [vmem:[#allocation2] sm:$0xff] 0.0
      %82 = vst [vmem:[#allocation2 + $0x8] sm:$0xff] 0.0
    $region41: #{tpu_custom_call.1} parent=1 // pred_fallthru
      _
    %p83 = scmp.eq.s32.totalorder 0, 0
    %p84 = pnand %p83, %p77
    %p85 = pneg %p84
    // Predicated region
    $region42: #{tpu_custom_call.1} parent=1 // pred_check
      _
    $region43: #{tpu_custom_call.1} parent=1 // pred_check_branch
      %87 = sbr.rel (%p84) target = $region45
    $region44: #{tpu_custom_call.1} parent=1 // pred_region
      %88 = vst [vmem:[#allocation3] sm:$0xff] 0.0
      %89 = vst [vmem:[#allocation3 + $0x8] sm:$0xff] 0.0
    $region45: #{tpu_custom_call.1} parent=1 // pred_fallthru
      _
    %v90 = vld [vmem:[#allocation4] sm:$0xf]
    %v91 = vld [vmem:[#allocation4 + $0x4] sm:$0xf]
    %v92 = vld [vmem:[#allocation2] sm:$0xff]
    %v93 = vld [vmem:[#allocation2 + $0x8] sm:$0xff]
    %v94 = vld [vmem:[#allocation7] sm:$0xf]
    %v95 = vld [vmem:[#allocation7 + $0x4] sm:$0xf]
    %v96 = vld [vmem:[#allocation7 + $0x8] sm:$0xf]
    %v97 = vld [vmem:[#allocation7 + $0xc] sm:$0xf]
    %v98 = vld [vmem:[#allocation7 + $0x10] sm:$0xf]
    %v99 = vld [vmem:[#allocation7 + $0x14] sm:$0xf]
    %v100 = vld [vmem:[#allocation7 + $0x18] sm:$0xf]
    %v101 = vld [vmem:[#allocation7 + $0x1c] sm:$0xf]
    %v102 = vld [vmem:[#allocation7 + $0x20] sm:$0xf]
    %v103 = vld [vmem:[#allocation7 + $0x24] sm:$0xf]
    %v104 = vld [vmem:[#allocation7 + $0x28] sm:$0xf]
    %v105 = vld [vmem:[#allocation7 + $0x2c] sm:$0xf]
    %v106 = vld [vmem:[#allocation7 + $0x30] sm:$0xf]
    %v107 = vld [vmem:[#allocation7 + $0x34] sm:$0xf]
    %v108 = vld [vmem:[#allocation7 + $0x38] sm:$0xf]
    %v109 = vld [vmem:[#allocation7 + $0x3c] sm:$0xf]
    %v112 = vunpack.c.l.b16 %v90
    %v113 = vunpack.c.l.b16 %v91
    %v114 = vpack.c.b16 %v113, %v112
    %v132 = vunpack.c.l.b16 %v94
    %v133 = vunpack.c.l.b16 %v95
    %v134 = vunpack.c.l.b16 %v96
    %v135 = vunpack.c.l.b16 %v97
    %v136 = vunpack.c.l.b16 %v98
    %v137 = vunpack.c.l.b16 %v99
    %v138 = vunpack.c.l.b16 %v100
    %v139 = vunpack.c.l.b16 %v101
    %v140 = vunpack.c.l.b16 %v102
    %v141 = vunpack.c.l.b16 %v103
    %v142 = vunpack.c.l.b16 %v104
    %v143 = vunpack.c.l.b16 %v105
    %v144 = vunpack.c.l.b16 %v106
    %v145 = vunpack.c.l.b16 %v107
    %v146 = vunpack.c.l.b16 %v108
    %v147 = vunpack.c.l.b16 %v109
    %v148 = vpack.c.b16 %v133, %v132
    %v149 = vpack.c.b16 %v135, %v134
    %v150 = vpack.c.b16 %v137, %v136
    %v151 = vpack.c.b16 %v139, %v138
    %v152 = vpack.c.b16 %v141, %v140
    %v153 = vpack.c.b16 %v143, %v142
    %v154 = vpack.c.b16 %v145, %v144
    %v155 = vpack.c.b16 %v147, %v146
    %164 = vmatprep.subr.bf16.mxu0 0
    %165 = vmatpush1.bf16.xpose.msra.mxu0 %v148
    %166 = vmatprep.subr.bf16.mxu0 0
    %167 = vmatpush1.bf16.xpose.msra.mxu0 %v149
    %168 = vmatprep.subr.bf16.mxu0 0
    %169 = vmatpush1.bf16.xpose.msra.mxu0 %v150
    %170 = vmatprep.subr.bf16.mxu0 0
    %171 = vmatpush1.bf16.xpose.msra.mxu0 %v151
    %172 = vmatprep.subr.bf16.mxu0 0
    %173 = vmatpush1.bf16.xpose.msra.mxu0 %v152
    %174 = vmatprep.subr.bf16.mxu0 0
    %175 = vmatpush1.bf16.xpose.msra.mxu0 %v153
    %176 = vmatprep.subr.bf16.mxu0 0
    %177 = vmatpush1.bf16.xpose.msra.mxu0 %v154
    %178 = vmatprep.subr.bf16.mxu0 0
    %179 = vmatpush1.bf16.xpose.msra.mxu0 %v155
    %180 = vmatprep.subr.bf16.mxu0 0
    %181 = vmatpush1.bf16.xpose.msra.mxu0 0
    %182 = vmatprep.subr.bf16.mxu0 0
    %183 = vmatpush1.bf16.xpose.msra.mxu0 0
    %184 = vmatprep.subr.bf16.mxu0 0
    %185 = vmatpush1.bf16.xpose.msra.mxu0 0
    %186 = vmatprep.subr.bf16.mxu0 0
    %187 = vmatpush1.bf16.xpose.msra.mxu0 0
    %188 = vmatprep.subr.bf16.mxu0 0
    %189 = vmatpush1.bf16.xpose.msra.mxu0 0
    %190 = vmatprep.subr.bf16.mxu0 0
    %191 = vmatpush1.bf16.xpose.msra.mxu0 0
    %192 = vmatprep.subr.bf16.mxu0 0
    %193 = vmatpush1.bf16.xpose.msra.mxu0 0
    %194 = vmatprep.subr.bf16.mxu0 0
    %195 = vmatpush1.bf16.xpose.msra.mxu0 0
    %196 = vmatprep.mubr.bf16.mxu0 0
    %197 = vmatmul.mubr.bf16.gmra.mrb[0].mxu0 %v114
    %v198 = vpop.f32.mrb[0].mxu0
    %v199 = vadd.f32 0.0, %v198
    %v200 = vpop.f32.mrb[0].mxu0
    %v201 = vpop.f32.mrb[0].mxu0
    %v202 = vadd.f32 0.0, %v201
    %v203 = vpop.f32.mrb[0].mxu0
    %204 = vdwg.mxu0
    %v205 = vadd.f32 %v92, %v199
    %v206 = vadd.f32 %v93, %v202
    %207 = vst [vmem:[#allocation2] sm:$0xff] %v205
    %208 = vst [vmem:[#allocation2 + $0x8] sm:$0xff] %v206
    // Predicated region
    $region46: #{tpu_custom_call.1} parent=1 // pred_check
      %p209 = pneg %p83
    $region47: #{tpu_custom_call.1} parent=1 // pred_check_branch
      %211 = sbr.rel (%p209) target = $region49
    $region48: #{tpu_custom_call.1} parent=1 // pred_region
      %v212 = vld [vmem:[#allocation3] sm:$0xff]
      %v213 = vld [vmem:[#allocation3 + $0x8] sm:$0xff]
      %v214 = vld [vmem:[#allocation9] sm:$0xf]
      %v215 = vld [vmem:[#allocation9 + $0x4] sm:$0xf]
      %v216 = vld [vmem:[#allocation9 + $0x8] sm:$0xf]
      %v217 = vld [vmem:[#allocation9 + $0xc] sm:$0xf]
      %v218 = vld [vmem:[#allocation9 + $0x10] sm:$0xf]
      %v219 = vld [vmem:[#allocation9 + $0x14] sm:$0xf]
      %v220 = vld [vmem:[#allocation9 + $0x18] sm:$0xf]
      %v221 = vld [vmem:[#allocation9 + $0x1c] sm:$0xf]
      %v222 = vld [vmem:[#allocation9 + $0x20] sm:$0xf]
      %v223 = vld [vmem:[#allocation9 + $0x24] sm:$0xf]
      %v224 = vld [vmem:[#allocation9 + $0x28] sm:$0xf]
      %v225 = vld [vmem:[#allocation9 + $0x2c] sm:$0xf]
      %v226 = vld [vmem:[#allocation9 + $0x30] sm:$0xf]
      %v227 = vld [vmem:[#allocation9 + $0x34] sm:$0xf]
      %v228 = vld [vmem:[#allocation9 + $0x38] sm:$0xf]
      %v229 = vld [vmem:[#allocation9 + $0x3c] sm:$0xf]
      %v246 = vunpack.c.l.b16 %v214
      %v247 = vunpack.c.l.b16 %v215
      %v248 = vunpack.c.l.b16 %v216
      %v249 = vunpack.c.l.b16 %v217
      %v250 = vunpack.c.l.b16 %v218
      %v251 = vunpack.c.l.b16 %v219
      %v252 = vunpack.c.l.b16 %v220
      %v253 = vunpack.c.l.b16 %v221
      %v254 = vunpack.c.l.b16 %v222
      %v255 = vunpack.c.l.b16 %v223
      %v256 = vunpack.c.l.b16 %v224
      %v257 = vunpack.c.l.b16 %v225
      %v258 = vunpack.c.l.b16 %v226
      %v259 = vunpack.c.l.b16 %v227
      %v260 = vunpack.c.l.b16 %v228
      %v261 = vunpack.c.l.b16 %v229
      %v262 = vpack.c.b16 %v247, %v246
      %v263 = vpack.c.b16 %v249, %v248
      %v264 = vpack.c.b16 %v251, %v250
      %v265 = vpack.c.b16 %v253, %v252
      %v266 = vpack.c.b16 %v255, %v254
      %v267 = vpack.c.b16 %v257, %v256
      %v268 = vpack.c.b16 %v259, %v258
      %v269 = vpack.c.b16 %v261, %v260
      %278 = vmatprep.subr.bf16.mxu0 0
      %279 = vmatpush1.bf16.xpose.msra.mxu0 %v262
      %280 = vmatprep.subr.bf16.mxu0 0
      %281 = vmatpush1.bf16.xpose.msra.mxu0 %v263
      %282 = vmatprep.subr.bf16.mxu0 0
      %283 = vmatpush1.bf16.xpose.msra.mxu0 %v264
      %284 = vmatprep.subr.bf16.mxu0 0
      %285 = vmatpush1.bf16.xpose.msra.mxu0 %v265
      %286 = vmatprep.subr.bf16.mxu0 0
      %287 = vmatpush1.bf16.xpose.msra.mxu0 %v266
      %288 = vmatprep.subr.bf16.mxu0 0
      %289 = vmatpush1.bf16.xpose.msra.mxu0 %v267
      %290 = vmatprep.subr.bf16.mxu0 0
      %291 = vmatpush1.bf16.xpose.msra.mxu0 %v268
      %292 = vmatprep.subr.bf16.mxu0 0
      %293 = vmatpush1.bf16.xpose.msra.mxu0 %v269
      %294 = vmatprep.subr.bf16.mxu0 0
      %295 = vmatpush1.bf16.xpose.msra.mxu0 0
      %296 = vmatprep.subr.bf16.mxu0 0
      %297 = vmatpush1.bf16.xpose.msra.mxu0 0
      %298 = vmatprep.subr.bf16.mxu0 0
      %299 = vmatpush1.bf16.xpose.msra.mxu0 0
      %300 = vmatprep.subr.bf16.mxu0 0
      %301 = vmatpush1.bf16.xpose.msra.mxu0 0
      %302 = vmatprep.subr.bf16.mxu0 0
      %303 = vmatpush1.bf16.xpose.msra.mxu0 0
      %304 = vmatprep.subr.bf16.mxu0 0
      %305 = vmatpush1.bf16.xpose.msra.mxu0 0
      %306 = vmatprep.subr.bf16.mxu0 0
      %307 = vmatpush1.bf16.xpose.msra.mxu0 0
      %308 = vmatprep.subr.bf16.mxu0 0
      %309 = vmatpush1.bf16.xpose.msra.mxu0 0
      %310 = vmatprep.mubr.bf16.mxu0 0
      %311 = vmatmul.mubr.bf16.gmra.mrb[0].mxu0 %v114
      %v312 = vpop.f32.mrb[0].mxu0
      %v313 = vadd.f32 0.0, %v312
      %v314 = vpop.f32.mrb[0].mxu0
      %v315 = vpop.f32.mrb[0].mxu0
      %v316 = vadd.f32 0.0, %v315
      %v317 = vpop.f32.mrb[0].mxu0
      %318 = vdwg.mxu0
      %v319 = vadd.f32 %v212, %v313
      %v320 = vadd.f32 %v213, %v316
      %321 = vst [vmem:[#allocation3] sm:$0xff] %v319
      %322 = vst [vmem:[#allocation3 + $0x8] sm:$0xff] %v320
    $region49: #{tpu_custom_call.1} parent=1 // pred_fallthru
      _
    // Predicated region
    $region50: #{tpu_custom_call.1} parent=1 // pred_check
      %p323 = pneg %p77
    $region51: #{tpu_custom_call.1} parent=1 // pred_check_branch
      %325 = sbr.rel (%p323) target = $region53
    $region52: #{tpu_custom_call.1} parent=1 // pred_region
      %v326 = vld [vmem:[#allocation3] sm:$0xff]
      %v327 = vld [vmem:[#allocation3 + $0x8] sm:$0xff]
      %v328 = vpack.c.bf16 %v327, %v326
      %v329 = vld [vmem:[#allocation10] sm:$0xf]
      %v330 = vld [vmem:[#allocation10 + $0x4] sm:$0xf]
      %v331 = vld [vmem:[#allocation10 + $0x8] sm:$0xf]
      %v332 = vld [vmem:[#allocation10 + $0xc] sm:$0xf]
      %v333 = vld [vmem:[#allocation10 + $0x10] sm:$0xf]
      %v334 = vld [vmem:[#allocation10 + $0x14] sm:$0xf]
      %v335 = vld [vmem:[#allocation10 + $0x18] sm:$0xf]
      %v336 = vld [vmem:[#allocation10 + $0x1c] sm:$0xf]
      %v337 = vld [vmem:[#allocation10 + $0x20] sm:$0xf]
      %v338 = vld [vmem:[#allocation10 + $0x24] sm:$0xf]
      %v339 = vld [vmem:[#allocation10 + $0x28] sm:$0xf]
      %v340 = vld [vmem:[#allocation10 + $0x2c] sm:$0xf]
      %v341 = vld [vmem:[#allocation10 + $0x30] sm:$0xf]
      %v342 = vld [vmem:[#allocation10 + $0x34] sm:$0xf]
      %v343 = vld [vmem:[#allocation10 + $0x38] sm:$0xf]
      %v344 = vld [vmem:[#allocation10 + $0x3c] sm:$0xf]
      %v361 = vunpack.c.l.b16 %v329
      %v362 = vunpack.c.l.b16 %v330
      %v363 = vunpack.c.l.b16 %v331
      %v364 = vunpack.c.l.b16 %v332
      %v365 = vunpack.c.l.b16 %v333
      %v366 = vunpack.c.l.b16 %v334
      %v367 = vunpack.c.l.b16 %v335
      %v368 = vunpack.c.l.b16 %v336
      %v369 = vunpack.c.l.b16 %v337
      %v370 = vunpack.c.l.b16 %v338
      %v371 = vunpack.c.l.b16 %v339
      %v372 = vunpack.c.l.b16 %v340
      %v373 = vunpack.c.l.b16 %v341
      %v374 = vunpack.c.l.b16 %v342
      %v375 = vunpack.c.l.b16 %v343
      %v376 = vunpack.c.l.b16 %v344
      %v377 = vpack.c.b16 %v362, %v361
      %v378 = vpack.c.b16 %v364, %v363
      %v379 = vpack.c.b16 %v366, %v365
      %v380 = vpack.c.b16 %v368, %v367
      %v381 = vpack.c.b16 %v370, %v369
      %v382 = vpack.c.b16 %v372, %v371
      %v383 = vpack.c.b16 %v374, %v373
      %v384 = vpack.c.b16 %v376, %v375
      %393 = vmatprep.subr.bf16.mxu0 0
      %394 = vmatpush1.bf16.xpose.msra.mxu0 %v377
      %395 = vmatprep.subr.bf16.mxu0 0
      %396 = vmatpush1.bf16.xpose.msra.mxu0 %v378
      %397 = vmatprep.subr.bf16.mxu0 0
      %398 = vmatpush1.bf16.xpose.msra.mxu0 %v379
      %399 = vmatprep.subr.bf16.mxu0 0
      %400 = vmatpush1.bf16.xpose.msra.mxu0 %v380
      %401 = vmatprep.subr.bf16.mxu0 0
      %402 = vmatpush1.bf16.xpose.msra.mxu0 %v381
      %403 = vmatprep.subr.bf16.mxu0 0
      %404 = vmatpush1.bf16.xpose.msra.mxu0 %v382
      %405 = vmatprep.subr.bf16.mxu0 0
      %406 = vmatpush1.bf16.xpose.msra.mxu0 %v383
      %407 = vmatprep.subr.bf16.mxu0 0
      %408 = vmatpush1.bf16.xpose.msra.mxu0 %v384
      %409 = vmatprep.subr.bf16.mxu0 0
      %410 = vmatpush1.bf16.xpose.msra.mxu0 0
      %411 = vmatprep.subr.bf16.mxu0 0
      %412 = vmatpush1.bf16.xpose.msra.mxu0 0
      %413 = vmatprep.subr.bf16.mxu0 0
      %414 = vmatpush1.bf16.xpose.msra.mxu0 0
      %415 = vmatprep.subr.bf16.mxu0 0
      %416 = vmatpush1.bf16.xpose.msra.mxu0 0
      %417 = vmatprep.subr.bf16.mxu0 0
      %418 = vmatpush1.bf16.xpose.msra.mxu0 0
      %419 = vmatprep.subr.bf16.mxu0 0
      %420 = vmatpush1.bf16.xpose.msra.mxu0 0
      %421 = vmatprep.subr.bf16.mxu0 0
      %422 = vmatpush1.bf16.xpose.msra.mxu0 0
      %423 = vmatprep.subr.bf16.mxu0 0
      %424 = vmatpush1.bf16.xpose.msra.mxu0 0
      %425 = vmatprep.mubr.bf16.mxu0 0
      %426 = vmatmul.mubr.bf16.gmra.mrb[0].mxu0 %v328
      %v427 = vpop.f32.mrb[0].mxu0
      %v428 = vadd.f32 0.0, %v427
      %v429 = vpop.f32.mrb[0].mxu0
      %v430 = vpop.f32.mrb[0].mxu0
      %v431 = vadd.f32 0.0, %v430
      %v432 = vpop.f32.mrb[0].mxu0
      %433 = vdwg.mxu0
      %v434 = vld [vmem:[#allocation2] sm:$0xff]
      %v435 = vld [vmem:[#allocation2 + $0x8] sm:$0xff]
      %v436 = vld [vmem:[%s2] sm:$0x1]
      %v438 = vlaneseq
      %v439 = vshrl.u32 %v438, 7
      %v440 = vsub.s32 0, %v439
      %v441 = vrot.slane %v436, %v440
      %v443 = vadd.f32 %v434, %v441
      %v444 = vadd.f32 %v435, %v441
      %v445 = vadd.f32 %v443, %v428
      %v446 = vadd.f32 %v444, %v431
      %447 = vst [vmem:[#allocation12] sm:$0xff] %v445
      %448 = vst [vmem:[#allocation12 + $0x8] sm:$0xff] %v446
    $region53: #{tpu_custom_call.1} parent=1 // pred_fallthru
      _
    // Predicated region
    $region54: #{tpu_custom_call.1} parent=1 // pred_check
      _
    $region55: #{tpu_custom_call.1} parent=1 // pred_check_branch
      %450 = sbr.rel (0) target = $region57
    $region56: #{tpu_custom_call.1} parent=1 // pred_region
      %s452 = ssub.s32 256, 256
      %453 = vsyncadd [#allocation6], %s452
      %s454 = sshll.u32 [#allocation12], 4
      %s455 = int_to_ptr.vmem [resolvable:$true] %s454
      %460 = dma.vmem_to_hbm [thread:$0]  %s455, 256, %s5, [#allocation6], 128, 128, 8
    $region57: #{tpu_custom_call.1} parent=1 // pred_fallthru
      _
    // Predicated region
    $region58: #{tpu_custom_call.1} parent=1 // pred_check
      _
    $region59: #{tpu_custom_call.1} parent=1 // pred_check_branch
      %462 = sbr.rel (0) target = $region61
    $region60: #{tpu_custom_call.1} parent=1 // pred_region
      %463 = dma.done [#allocation6], 256
    $region61: #{tpu_custom_call.1} parent=1 // pred_fallthru
      _
    %464 = vsyncpa [#allocation5], 1
    %465 = vsyncpa [#allocation8], 1
    %466 = vsyncpa [#allocation11], 1
    %467 = vsyncpa [#allocation6], 1

</llo_original>
